<compile_context>
chip_gen: v6e
topology: v6e:2x2x1
jax: 0.10.0
libtpu: 0.0.40
codegen_flags: <defaults>
</compile_context>

<pallas_src>
import math
import functools

import jax
import jax.numpy as jnp
from jax.experimental import pallas as pl
from jax.experimental.pallas import tpu as pltpu


_INV_SQRT2 = 1.0 / math.sqrt(2.0)
_LANE = 128
_SUBLANE = 8


def _round_up(x: int, m: int) -> int:
    return (x + m - 1) // m * m


def _exact_gelu(x):
    # Matches torch.nn.GELU() default (erf-based).
    return 0.5 * x * (1.0 + jax.lax.erf(x * _INV_SQRT2))


def _vmem_budget_bytes() -> int:
    """~75% of per-core VMEM: ~48 MiB on v7x (64 MiB), ~96 MiB on v5e/v6e (128 MiB)."""
    cap = None
    try:
        info = pltpu.get_tpu_info()
        for attr in ("vmem_capacity_bytes", "vmem_bytes", "vmem_size_bytes"):
            v = getattr(info, attr, None)
            if v:
                cap = int(v)
                break
    except Exception:
        cap = None
    if not cap:
        cap = 64 * 2**20  # conservative default = smallest generation (v7x per TC)
    return (cap * 3) // 4


# ----------------------------------------------------------------------------
# Parameter construction mirroring MakeMLP's layer structure.
# ----------------------------------------------------------------------------
def make_mlp_params(cfg, in_dim, out_dim, key):
    """Returns a list of ('linear', W [in,out], b [out]) / ('gelu',) descriptors."""
    dims = []
    in_channels = in_dim
    for i in cfg:
        if isinstance(i, int):
            dims.append(("linear", in_channels, i))
            in_channels = i
        else:
            dims.append(("gelu", None, None))
    dims.append(("linear", in_channels, out_dim))

    params = []
    for kind, fan_in, fan_out in dims:
        if kind == "gelu":
            params.append(("gelu",))
            continue
        key, kw, kb = jax.random.split(key, 3)
        # PyTorch nn.Linear default init: U(-1/sqrt(fan_in), 1/sqrt(fan_in))
        bound = 1.0 / math.sqrt(fan_in)
        W = jax.random.uniform(kw, (fan_in, fan_out), jnp.float32, -bound, bound)
        b = jax.random.uniform(kb, (fan_out,), jnp.float32, -bound, bound)
        params.append(("linear", W, b))
    return params


def prepare_mlp_params(params):
    """One-time lane-padding (to multiples of 128) + bf16 weight cast.

    Hoisted out of the forward so each call does not re-read/re-write the
    whole weight set in HBM.
    """
    prepared = []
    for p in params:
        if p[0] == "gelu":
            prepared.append(("gelu",))
            continue
        W, b = p[1], p[2]
        fin, fout = W.shape
        kp, np_ = _round_up(fin, _LANE), _round_up(fout, _LANE)
        Wp = jnp.zeros((kp, np_), jnp.bfloat16).at[:fin, :fout].set(
            W.astype(jnp.bfloat16))
        bp = jnp.zeros((1, np_), jnp.float32).at[:, :fout].set(
            b.astype(jnp.float32))
        prepared.append(("linear", Wp, bp, fin, fout))
    return prepared


# ----------------------------------------------------------------------------
# Fused MLP kernel: static Python loop over layers, activation stays in VMEM.
# ----------------------------------------------------------------------------
def _fused_mlp_kernel(*refs, op_kinds):
    x_ref = refs[0]          # [TILE_B, Din_pad]  x.dtype
    o_ref = refs[-1]         # [TILE_B, Dout_pad] out_dtype
    param_refs = refs[1:-1]  # (W0, b0, W1, b1, ...) padded, W bf16 / b f32

    h = x_ref[...]
    li = 0
    for kind in op_kinds:
        if kind == "linear":
            w = param_refs[2 * li][...]       # [Kp, Np] bf16
            b = param_refs[2 * li + 1][...]   # [1, Np]  f32
            # bf16 MXU matmul, f32 accumulation; bias add in f32.
            h = jnp.dot(h.astype(jnp.bfloat16), w,
                        preferred_element_type=jnp.float32) + b
            li += 1
        else:  # "gelu" — elementwise on VPU/EUP.
            h = _exact_gelu(h.astype(jnp.float32))
    o_ref[...] = h.astype(o_ref.dtype)


def _choose_tile_b(B, bytes_per_row, weight_bytes, budget):
    """Pick a batch tile: fit VMEM, balance padding waste vs per-step overhead,
    and prefer >=2 grid steps so v7x's 2 TensorCores both get work."""
    act_budget = budget - weight_bytes - (8 << 20)  # headroom for compiler scratch
    candidates = [1024, 512, 256, 128, 64, 32, 16, 8]
    feasible = [tb for tb in candidates if tb * bytes_per_row <= act_budget]
    if not feasible:
        return None  # caller falls back to the layer-wise tiled path

    def cost(tb):
        b_pad = _round_up(B, tb)
        # padded rows (wasted matmul/GELU work) + ~16 rows-equivalent per step
        return b_pad + 16 * (b_pad // tb)

    tb = min(feasible, key=lambda t: (cost(t), -t))
    b_pad = _round_up(B, tb)
    if b_pad // tb == 1 and tb > _SUBLANE:
        half = max(_SUBLANE, _round_up(tb // 2, _SUBLANE))
        if _round_up(B, half) <= b_pad:  # only if it adds no padding waste
            tb = half
    return tb


def _fused_forward(prepared, xp, B_pad, Din_pad, Dout_pad, tile_b, out_dtype,
                   weight_bytes, max_feat_pad, budget, resident_weights):
    num_tiles = B_pad // tile_b
    op_kinds, flat_args, param_specs = [], [], []
    n_flops = 0
    n_trans = 0
    feat_pad = Din_pad
    for p in prepared:
        if p[0] == "linear":
            _, Wp, bp, _, _ = p
            kp, np_ = Wp.shape
            flat_args += [Wp, bp]
            if resident_weights:
                # Constant index_map + single buffering: weights stay VMEM
                # resident across batch tiles without a 2x double-buffer copy.
                param_specs += [
                    pl.BlockSpec((kp, np_), lambda i: (0, 0),
                                 pipeline_mode=pl.Buffered(1)),
                    pl.BlockSpec((1, np_), lambda i: (0, 0),
                                 pipeline_mode=pl.Buffered(1)),
                ]
            else:
                param_specs += [pl.BlockSpec((kp, np_), lambda i: (0, 0)),
                                pl.BlockSpec((1, np_), lambda i: (0, 0))]
            op_kinds.append("linear")
            feat_pad = np_
            n_flops += 2 * B_pad * kp * np_
        else:
            op_kinds.append("gelu")
            n_trans += B_pad * feat_pad

    x_item = xp.dtype.itemsize
    out_item = jnp.dtype(out_dtype).itemsize
    w_factor = 1 if resident_weights else 2
    need = (w_factor * weight_bytes
            + 2 * tile_b * Din_pad * x_item        # double-buffered input tile
            + 2 * tile_b * Dout_pad * out_item     # double-buffered output tile
            + 4 * tile_b * max_feat_pad * 4        # live intermediate activations
            + (8 << 20))                           # compiler scratch / spill margin
    vmem_limit = int(min(max(need, 16 << 20), budget))

    cost = pl.CostEstimate(
        flops=int(n_flops),
        transcendentals=int(n_trans),
        bytes_accessed=int(xp.size * x_item + weight_bytes
                           + B_pad * Dout_pad * out_item),
    )

    kernel = functools.partial(_fused_mlp_kernel, op_kinds=tuple(op_kinds))
    return pl.pallas_call(
        kernel,
        out_shape=jax.ShapeDtypeStruct((B_pad, Dout_pad), out_dtype),
        grid=(num_tiles,),
        in_specs=[pl.BlockSpec((tile_b, Din_pad), lambda i: (i, 0))] + param_specs,
        out_specs=pl.BlockSpec((tile_b, Dout_pad), lambda i: (i, 0)),
        compiler_params=pltpu.CompilerParams(
            dimension_semantics=("parallel",),
            vmem_limit_bytes=vmem_limit),
        cost_estimate=cost,
    )(xp, *flat_args)


# ----------------------------------------------------------------------------
# Layer-wise K/N-tiled fallback (weights too large for whole-MLP VMEM residency).
# ----------------------------------------------------------------------------
def _pick_tile(n, candidates):
    for c in candidates:
        if n % c == 0:
            return c
    return n


def _linear_kernel(x_ref, w_ref, b_ref, o_ref, acc_ref, *, n_gelu):
    @pl.when(pl.program_id(2) == 0)
    def _():
        acc_ref[...] = jnp.zeros_like(acc_ref)

    acc_ref[...] += jnp.dot(x_ref[...].astype(jnp.bfloat16), w_ref[...],
                            preferred_element_type=jnp.float32)

    @pl.when(pl.program_id(2) == pl.num_programs(2) - 1)
    def _():
        h = acc_ref[...] + b_ref[...]
        for _ in range(n_gelu):
            h = _exact_gelu(h)
        o_ref[...] = h.astype(o_ref.dtype)


def _tiled_linear(hp, Wp, bp, n_gelu, out_dtype):
    Bp, Kp = hp.shape
    _, Np = Wp.shape
    tm = _pick_tile(Bp, [512, 256, 128, 64, 32, 16, 8])
    tn = _pick_tile(Np, [512, 256, 128])
    tk = _pick_tile(Kp, [512, 256, 128])
    kernel = functools.partial(_linear_kernel, n_gelu=n_gelu)
    return pl.pallas_call(
        kernel,
        out_shape=jax.ShapeDtypeStruct((Bp, Np), out_dtype),
        grid=(Bp // tm, Np // tn, Kp // tk),
        in_specs=[pl.BlockSpec((tm, tk), lambda i, j, k: (i, k)),
                  pl.BlockSpec((tk, tn), lambda i, j, k: (k, j)),
                  pl.BlockSpec((1, tn), lambda i, j, k: (0, j))],
        out_specs=pl.BlockSpec((tm, tn), lambda i, j, k: (i, j)),
        scratch_shapes=[pltpu.VMEM((tm, tn), jnp.float32)],
        compiler_params=pltpu.CompilerParams(
            dimension_semantics=("parallel", "parallel", "arbitrary")),
    )(hp, Wp, bp)


def _gelu_kernel(x_ref, o_ref):
    o_ref[...] = _exact_gelu(x_ref[...].astype(jnp.float32)).astype(o_ref.dtype)


def _tiled_gelu(hp):
    Bp, D = hp.shape
    tm = _pick_tile(Bp, [512, 256, 128, 64, 32, 16, 8])
    return pl.pallas_call(
        _gelu_kernel,
        out_shape=jax.ShapeDtypeStruct((Bp, D), jnp.float32),
        grid=(Bp // tm,),
        in_specs=[pl.BlockSpec((tm, D), lambda i: (i, 0))],
        out_specs=pl.BlockSpec((tm, D), lambda i: (i, 0)),
        compiler_params=pltpu.CompilerParams(dimension_semantics=("parallel",)),
    )(hp)


def _layerwise_forward(prepared, xp, out_dtype):
    """One K/N-tiled matmul kernel per Linear (f32 acc scratch + pl.when
    init/finalize); immediately-following GELUs are fused into the finalize."""
    h = xp
    n_ops = len(prepared)
    i = 0
    while i < n_ops:
        if prepared[i][0] == "gelu":
            h = _tiled_gelu(h)
            i += 1
            continue
        _, Wp, bp, _, _ = prepared[i]
        n_gelu = 0
        j = i + 1
        while j < n_ops and prepared[j][0] == "gelu":
            n_gelu += 1
            j += 1
        is_last = (j == n_ops)
        h = _tiled_linear(h, Wp, bp, n_gelu,
                          out_dtype if is_last else jnp.float32)
        i = j
    return h


# ----------------------------------------------------------------------------
# Forward: single fused pallas_call when weights fit VMEM, tiled fallback else.
# ----------------------------------------------------------------------------
def mlp_block_forward(prepared, x, *, out_dtype=jnp.float32, tile_b=None,
                      force_layerwise=False):
    B, Din = x.shape
    Din_pad = _round_up(Din, _LANE)

    feat = Din
    out_dim = Din
    max_feat_pad = Din_pad
    weight_bytes = 0
    for p in prepared:
        if p[0] == "linear":
            _, Wp, bp, fin, fout = p
            assert fin == feat, "cfg / in_dim mismatch"
            feat = fout
            out_dim = fout
            max_feat_pad = max(max_feat_pad, Wp.shape[1])
            weight_bytes += int(Wp.size) * Wp.dtype.itemsize
            weight_bytes += int(bp.size) * bp.dtype.itemsize
    Dout_pad = _round_up(out_dim, _LANE)

    budget = _vmem_budget_bytes()
    x_item = x.dtype.itemsize
    out_item = jnp.dtype(out_dtype).itemsize
    bytes_per_row = (2 * Din_pad * x_item + 2 * Dout_pad * out_item
                     + 4 * max_feat_pad * 4)

    if tile_b is None:
        tile_b = _choose_tile_b(B, bytes_per_row, weight_bytes, budget)

    if (tile_b is not None) and not force_layerwise:
        B_pad = _round_up(B, tile_b)
        # Skip the host-side pad/copy pre-pass when x is already aligned; when
        # padding is needed it stays in x's dtype (bf16 cast happens in-kernel).
        if B_pad == B and Din_pad == Din:
            xp = x
        else:
            xp = jnp.zeros((B_pad, Din_pad), x.dtype).at[:B, :Din].set(x)
        try:
            out = _fused_forward(prepared, xp, B_pad, Din_pad, Dout_pad, tile_b,
                                 out_dtype, weight_bytes, max_feat_pad, budget,
                                 resident_weights=True)
        except Exception:
            # pl.Buffered(1) (single-buffered resident weights) unsupported on
            # this JAX/Mosaic version -> retry with default double buffering.
            out = _fused_forward(prepared, xp, B_pad, Din_pad, Dout_pad, tile_b,
                                 out_dtype, weight_bytes, max_feat_pad, budget,
                                 resident_weights=False)
        return out[:B, :out_dim]

    # Weight set too large for VMEM residency (threshold ~2x lower on v7x):
    # layer-wise K/N-tiled path with auto-pipelined weight DMA.
    B_pad = _round_up(B, 128) if B >= 128 else _round_up(B, _SUBLANE)
    if B_pad == B and Din_pad == Din:
        xp = x
    else:
        xp = jnp.zeros((B_pad, Din_pad), x.dtype).at[:B, :Din].set(x)
    out = _layerwise_forward(prepared, xp, out_dtype)
    return out[:B, :out_dim]


# ----------------------------------------------------------------------------
# Pure-JAX reference with matching numerics (bf16 MXU inputs, f32 accumulate).
# ----------------------------------------------------------------------------
def mlp_block_reference(params, x):
    h = x
    for p in params:
        if p[0] == "linear":
            h = jnp.dot(h.astype(jnp.bfloat16), p[1].astype(jnp.bfloat16),
                        preferred_element_type=jnp.float32) + p[2].astype(jnp.float32)
        else:
            h = _exact_gelu(h.astype(jnp.float32))
    return h.astype(jnp.float32)


if __name__ == "__main__":
    key = jax.random.PRNGKey(0)
    k_param, k_data = jax.random.split(key)

    # Small synthetic config consistent with MLPBlock(cfg, in_dim, out_dim)
    cfg = [32, "gelu", 32, "gelu"]
    in_dim, out_dim = 16, 8
    batch = 8

    params = make_mlp_params(cfg, in_dim, out_dim, k_param)
    prepared = prepare_mlp_params(params)          # one-time pad/cast, cached
    x = jax.random.normal(k_data, (batch, in_dim), dtype=jnp.float32)

    ref = mlp_block_reference(params, x)

    # Main fused path (VMEM-resident weights).
    out = mlp_block_forward(prepared, x)
    out = jax.block_until_ready(out)
    assert out.shape == (batch, out_dim), out.shape
    assert jnp.allclose(out, ref, atol=1e-3, rtol=1e-3), \
        float(jnp.max(jnp.abs(out - ref)))

    # Also exercise the layer-wise K/N-tiled fallback (used when the padded
    # weight set would not fit the per-generation VMEM budget).
    out_lw = mlp_block_forward(prepared, x, force_layerwise=True)
    out_lw = jax.block_until_ready(out_lw)
    assert out_lw.shape == (batch, out_dim), out_lw.shape
    assert jnp.allclose(out_lw, ref, atol=1e-3, rtol=1e-3), \
        float(jnp.max(jnp.abs(out_lw - ref)))

    print("KERNEL_OK")
</pallas_src>

<mosaic_0001>
module attributes {stable_mosaic.version = 11 : i64} {
  func.func @_fused_mlp_kernel(%arg0: i32, %arg1: memref<8x128xf32, #tpu.memory_space<vmem>>, %arg2: memref<128x128xbf16, #tpu.memory_space<vmem>>, %arg3: memref<1x128xf32, #tpu.memory_space<vmem>>, %arg4: memref<128x128xbf16, #tpu.memory_space<vmem>>, %arg5: memref<1x128xf32, #tpu.memory_space<vmem>>, %arg6: memref<128x128xbf16, #tpu.memory_space<vmem>>, %arg7: memref<1x128xf32, #tpu.memory_space<vmem>>, %arg8: memref<8x128xf32, #tpu.memory_space<vmem>>) attributes {dimension_semantics = [#tpu.dimension_semantics<parallel>], iteration_bounds = array<i64: 1>, scalar_prefetch = 0 : i64, scratch_operands = 0 : i64, tpu.core_type = #tpu.core_type<tc>, window_params = [{transform_indices = @transform_0, window_bounds = array<i64: 8, 128>}, {pipeline_mode = #tpu.pipeline_mode<synchronous>, transform_indices = @transform_1, window_bounds = array<i64: 128, 128>}, {pipeline_mode = #tpu.pipeline_mode<synchronous>, transform_indices = @transform_2, window_bounds = array<i64: 1, 128>}, {pipeline_mode = #tpu.pipeline_mode<synchronous>, transform_indices = @transform_3, window_bounds = array<i64: 128, 128>}, {pipeline_mode = #tpu.pipeline_mode<synchronous>, transform_indices = @transform_4, window_bounds = array<i64: 1, 128>}, {pipeline_mode = #tpu.pipeline_mode<synchronous>, transform_indices = @transform_5, window_bounds = array<i64: 128, 128>}, {pipeline_mode = #tpu.pipeline_mode<synchronous>, transform_indices = @transform_6, window_bounds = array<i64: 1, 128>}, {transform_indices = @transform_7, window_bounds = array<i64: 8, 128>}]} {
    %c0 = arith.constant 0 : index
    %c0_0 = arith.constant 0 : index
    %0 = vector.load %arg1[%c0, %c0_0] : memref<8x128xf32, #tpu.memory_space<vmem>>, vector<8x128xf32>
    %c0_1 = arith.constant 0 : index
    %c0_2 = arith.constant 0 : index
    %1 = vector.load %arg2[%c0_1, %c0_2] : memref<128x128xbf16, #tpu.memory_space<vmem>>, vector<128x128xbf16>
    %c0_3 = arith.constant 0 : index
    %c0_4 = arith.constant 0 : index
    %2 = vector.load %arg3[%c0_3, %c0_4] : memref<1x128xf32, #tpu.memory_space<vmem>>, vector<1x128xf32>
    %3 = arith.truncf %0 : vector<8x128xf32> to vector<8x128xbf16>
    %cst = arith.constant dense<0.000000e+00> : vector<8x128xf32>
    %4 = tpu.matmul %3, %1, %cst {dimension_numbers = #tpu.dot_dimension_numbers<[1], [0], [0], [1], [0, 0, 1, 1], [], []>} : vector<8x128xbf16>, vector<128x128xbf16>, vector<8x128xf32> -> vector<8x128xf32>
    %5 = vector.broadcast %2 : vector<1x128xf32> to vector<8x128xf32>
    %6 = arith.addf %4, %5 : vector<8x128xf32>
    %cst_5 = arith.constant 5.000000e-01 : f32
    %7 = vector.broadcast %cst_5 : f32 to vector<8x128xf32>
    %8 = arith.mulf %7, %6 : vector<8x128xf32>
    %cst_6 = arith.constant 0.707106769 : f32
    %9 = vector.broadcast %cst_6 : f32 to vector<8x128xf32>
    %10 = arith.mulf %6, %9 : vector<8x128xf32>
    %11 = math.erf %10 : vector<8x128xf32>
    %cst_7 = arith.constant 1.000000e+00 : f32
    %12 = vector.broadcast %cst_7 : f32 to vector<8x128xf32>
    %13 = arith.addf %12, %11 : vector<8x128xf32>
    %14 = arith.mulf %8, %13 : vector<8x128xf32>
    %c0_8 = arith.constant 0 : index
    %c0_9 = arith.constant 0 : index
    %15 = vector.load %arg4[%c0_8, %c0_9] : memref<128x128xbf16, #tpu.memory_space<vmem>>, vector<128x128xbf16>
    %c0_10 = arith.constant 0 : index
    %c0_11 = arith.constant 0 : index
    %16 = vector.load %arg5[%c0_10, %c0_11] : memref<1x128xf32, #tpu.memory_space<vmem>>, vector<1x128xf32>
    %17 = arith.truncf %14 : vector<8x128xf32> to vector<8x128xbf16>
    %cst_12 = arith.constant dense<0.000000e+00> : vector<8x128xf32>
    %18 = tpu.matmul %17, %15, %cst_12 {dimension_numbers = #tpu.dot_dimension_numbers<[1], [0], [0], [1], [0, 0, 1, 1], [], []>} : vector<8x128xbf16>, vector<128x128xbf16>, vector<8x128xf32> -> vector<8x128xf32>
    %19 = vector.broadcast %16 : vector<1x128xf32> to vector<8x128xf32>
    %20 = arith.addf %18, %19 : vector<8x128xf32>
    %cst_13 = arith.constant 5.000000e-01 : f32
    %21 = vector.broadcast %cst_13 : f32 to vector<8x128xf32>
    %22 = arith.mulf %21, %20 : vector<8x128xf32>
    %cst_14 = arith.constant 0.707106769 : f32
    %23 = vector.broadcast %cst_14 : f32 to vector<8x128xf32>
    %24 = arith.mulf %20, %23 : vector<8x128xf32>
    %25 = math.erf %24 : vector<8x128xf32>
    %cst_15 = arith.constant 1.000000e+00 : f32
    %26 = vector.broadcast %cst_15 : f32 to vector<8x128xf32>
    %27 = arith.addf %26, %25 : vector<8x128xf32>
    %28 = arith.mulf %22, %27 : vector<8x128xf32>
    %c0_16 = arith.constant 0 : index
    %c0_17 = arith.constant 0 : index
    %29 = vector.load %arg6[%c0_16, %c0_17] : memref<128x128xbf16, #tpu.memory_space<vmem>>, vector<128x128xbf16>
    %c0_18 = arith.constant 0 : index
    %c0_19 = arith.constant 0 : index
    %30 = vector.load %arg7[%c0_18, %c0_19] : memref<1x128xf32, #tpu.memory_space<vmem>>, vector<1x128xf32>
    %31 = arith.truncf %28 : vector<8x128xf32> to vector<8x128xbf16>
    %cst_20 = arith.constant dense<0.000000e+00> : vector<8x128xf32>
    %32 = tpu.matmul %31, %29, %cst_20 {dimension_numbers = #tpu.dot_dimension_numbers<[1], [0], [0], [1], [0, 0, 1, 1], [], []>} : vector<8x128xbf16>, vector<128x128xbf16>, vector<8x128xf32> -> vector<8x128xf32>
    %33 = vector.broadcast %30 : vector<1x128xf32> to vector<8x128xf32>
    %34 = arith.addf %32, %33 : vector<8x128xf32>
    %c0_21 = arith.constant 0 : index
    %c0_22 = arith.constant 0 : index
    %35 = vector.load %arg8[%c0_21, %c0_22] : memref<8x128xf32, #tpu.memory_space<vmem>>, vector<8x128xf32>
    tpu.vector_store %arg8[%c0_21, %c0_22], %34 {strides = array<i32>} : memref<8x128xf32, #tpu.memory_space<vmem>>, vector<8x128xf32>,
    return
  }
  func.func @transform_0(%arg0: i32) -> (i32, i32) {
    %c0_i32 = arith.constant 0 : i32
    %c0_i32_0 = arith.constant 0 : i32
    return %arg0, %c0_i32 : i32, i32
  }
  func.func @transform_1(%arg0: i32) -> (i32, i32) {
    %c0_i32 = arith.constant 0 : i32
    %c0_i32_0 = arith.constant 0 : i32
    %c0_i32_1 = arith.constant 0 : i32
    return %c0_i32, %c0_i32_0 : i32, i32
  }
  func.func @transform_2(%arg0: i32) -> (i32, i32) {
    %c0_i32 = arith.constant 0 : i32
    %c0_i32_0 = arith.constant 0 : i32
    %c0_i32_1 = arith.constant 0 : i32
    return %c0_i32, %c0_i32_0 : i32, i32
  }
  func.func @transform_3(%arg0: i32) -> (i32, i32) {
    %c0_i32 = arith.constant 0 : i32
    %c0_i32_0 = arith.constant 0 : i32
    %c0_i32_1 = arith.constant 0 : i32
    return %c0_i32, %c0_i32_0 : i32, i32
  }
  func.func @transform_4(%arg0: i32) -> (i32, i32) {
    %c0_i32 = arith.constant 0 : i32
    %c0_i32_0 = arith.constant 0 : i32
    %c0_i32_1 = arith.constant 0 : i32
    return %c0_i32, %c0_i32_0 : i32, i32
  }
  func.func @transform_5(%arg0: i32) -> (i32, i32) {
    %c0_i32 = arith.constant 0 : i32
    %c0_i32_0 = arith.constant 0 : i32
    %c0_i32_1 = arith.constant 0 : i32
    return %c0_i32, %c0_i32_0 : i32, i32
  }
  func.func @transform_6(%arg0: i32) -> (i32, i32) {
    %c0_i32 = arith.constant 0 : i32
    %c0_i32_0 = arith.constant 0 : i32
    %c0_i32_1 = arith.constant 0 : i32
    return %c0_i32, %c0_i32_0 : i32, i32
  }
  func.func @transform_7(%arg0: i32) -> (i32, i32) {
    %c0_i32 = arith.constant 0 : i32
    %c0_i32_0 = arith.constant 0 : i32
    return %arg0, %c0_i32 : i32, i32
  }
}

module attributes {stable_mosaic.version = 11 : i64} {
  func.func @_fused_mlp_kernel(%arg0: i32, %arg1: memref<8x128xf32, #tpu.memory_space<vmem>>, %arg2: memref<128x128xbf16, #tpu.memory_space<vmem>>, %arg3: memref<1x128xf32, #tpu.memory_space<vmem>>, %arg4: memref<128x128xbf16, #tpu.memory_space<vmem>>, %arg5: memref<1x128xf32, #tpu.memory_space<vmem>>, %arg6: memref<128x128xbf16, #tpu.memory_space<vmem>>, %arg7: memref<1x128xf32, #tpu.memory_space<vmem>>, %arg8: memref<8x128xf32, #tpu.memory_space<vmem>>) attributes {dimension_semantics = [#tpu.dimension_semantics<parallel>], iteration_bounds = array<i64: 1>, scalar_prefetch = 0 : i64, scratch_operands = 0 : i64, tpu.core_type = #tpu.core_type<tc>, window_params = [{transform_indices = @transform_0, window_bounds = array<i64: 8, 128>}, {pipeline_mode = #tpu.pipeline_mode<synchronous>, transform_indices = @transform_1, window_bounds = array<i64: 128, 128>}, {pipeline_mode = #tpu.pipeline_mode<synchronous>, transform_indices = @transform_2, window_bounds = array<i64: 1, 128>}, {pipeline_mode = #tpu.pipeline_mode<synchronous>, transform_indices = @transform_3, window_bounds = array<i64: 128, 128>}, {pipeline_mode = #tpu.pipeline_mode<synchronous>, transform_indices = @transform_4, window_bounds = array<i64: 1, 128>}, {pipeline_mode = #tpu.pipeline_mode<synchronous>, transform_indices = @transform_5, window_bounds = array<i64: 128, 128>}, {pipeline_mode = #tpu.pipeline_mode<synchronous>, transform_indices = @transform_6, window_bounds = array<i64: 1, 128>}, {transform_indices = @transform_7, window_bounds = array<i64: 8, 128>}]} {
    %c0 = arith.constant 0 : index
    %c0_0 = arith.constant 0 : index
    %0 = vector.load %arg1[%c0, %c0_0] : memref<8x128xf32, #tpu.memory_space<vmem>>, vector<8x128xf32>
    %c0_1 = arith.constant 0 : index
    %c0_2 = arith.constant 0 : index
    %1 = vector.load %arg2[%c0_1, %c0_2] : memref<128x128xbf16, #tpu.memory_space<vmem>>, vector<128x128xbf16>
    %c0_3 = arith.constant 0 : index
    %c0_4 = arith.constant 0 : index
    %2 = vector.load %arg3[%c0_3, %c0_4] : memref<1x128xf32, #tpu.memory_space<vmem>>, vector<1x128xf32>
    %3 = arith.truncf %0 : vector<8x128xf32> to vector<8x128xbf16>
    %cst = arith.constant dense<0.000000e+00> : vector<8x128xf32>
    %4 = tpu.matmul %3, %1, %cst {dimension_numbers = #tpu.dot_dimension_numbers<[1], [0], [0], [1], [0, 0, 1, 1], [], []>} : vector<8x128xbf16>, vector<128x128xbf16>, vector<8x128xf32> -> vector<8x128xf32>
    %5 = vector.broadcast %2 : vector<1x128xf32> to vector<8x128xf32>
    %6 = arith.addf %4, %5 : vector<8x128xf32>
    %cst_5 = arith.constant 5.000000e-01 : f32
    %7 = vector.broadcast %cst_5 : f32 to vector<8x128xf32>
    %8 = arith.mulf %7, %6 : vector<8x128xf32>
    %cst_6 = arith.constant 0.707106769 : f32
    %9 = vector.broadcast %cst_6 : f32 to vector<8x128xf32>
    %10 = arith.mulf %6, %9 : vector<8x128xf32>
    %11 = math.erf %10 : vector<8x128xf32>
    %cst_7 = arith.constant 1.000000e+00 : f32
    %12 = vector.broadcast %cst_7 : f32 to vector<8x128xf32>
    %13 = arith.addf %12, %11 : vector<8x128xf32>
    %14 = arith.mulf %8, %13 : vector<8x128xf32>
    %c0_8 = arith.constant 0 : index
    %c0_9 = arith.constant 0 : index
    %15 = vector.load %arg4[%c0_8, %c0_9] : memref<128x128xbf16, #tpu.memory_space<vmem>>, vector<128x128xbf16>
    %c0_10 = arith.constant 0 : index
    %c0_11 = arith.constant 0 : index
    %16 = vector.load %arg5[%c0_10, %c0_11] : memref<1x128xf32, #tpu.memory_space<vmem>>, vector<1x128xf32>
    %17 = arith.truncf %14 : vector<8x128xf32> to vector<8x128xbf16>
    %cst_12 = arith.constant dense<0.000000e+00> : vector<8x128xf32>
    %18 = tpu.matmul %17, %15, %cst_12 {dimension_numbers = #tpu.dot_dimension_numbers<[1], [0], [0], [1], [0, 0, 1, 1], [], []>} : vector<8x128xbf16>, vector<128x128xbf16>, vector<8x128xf32> -> vector<8x128xf32>
    %19 = vector.broadcast %16 : vector<1x128xf32> to vector<8x128xf32>
    %20 = arith.addf %18, %19 : vector<8x128xf32>
    %cst_13 = arith.constant 5.000000e-01 : f32
    %21 = vector.broadcast %cst_13 : f32 to vector<8x128xf32>
    %22 = arith.mulf %21, %20 : vector<8x128xf32>
    %cst_14 = arith.constant 0.707106769 : f32
    %23 = vector.broadcast %cst_14 : f32 to vector<8x128xf32>
    %24 = arith.mulf %20, %23 : vector<8x128xf32>
    %25 = math.erf %24 : vector<8x128xf32>
    %cst_15 = arith.constant 1.000000e+00 : f32
    %26 = vector.broadcast %cst_15 : f32 to vector<8x128xf32>
    %27 = arith.addf %26, %25 : vector<8x128xf32>
    %28 = arith.mulf %22, %27 : vector<8x128xf32>
    %c0_16 = arith.constant 0 : index
    %c0_17 = arith.constant 0 : index
    %29 = vector.load %arg6[%c0_16, %c0_17] : memref<128x128xbf16, #tpu.memory_space<vmem>>, vector<128x128xbf16>
    %c0_18 = arith.constant 0 : index
    %c0_19 = arith.constant 0 : index
    %30 = vector.load %arg7[%c0_18, %c0_19] : memref<1x128xf32, #tpu.memory_space<vmem>>, vector<1x128xf32>
    %31 = arith.truncf %28 : vector<8x128xf32> to vector<8x128xbf16>
    %cst_20 = arith.constant dense<0.000000e+00> : vector<8x128xf32>
    %32 = tpu.matmul %31, %29, %cst_20 {dimension_numbers = #tpu.dot_dimension_numbers<[1], [0], [0], [1], [0, 0, 1, 1], [], []>} : vector<8x128xbf16>, vector<128x128xbf16>, vector<8x128xf32> -> vector<8x128xf32>
    %33 = vector.broadcast %30 : vector<1x128xf32> to vector<8x128xf32>
    %34 = arith.addf %32, %33 : vector<8x128xf32>
    %c0_21 = arith.constant 0 : index
    %c0_22 = arith.constant 0 : index
    %35 = vector.load %arg8[%c0_21, %c0_22] : memref<8x128xf32, #tpu.memory_space<vmem>>, vector<8x128xf32>
    tpu.vector_store %arg8[%c0_21, %c0_22], %34 {strides = array<i32>} : memref<8x128xf32, #tpu.memory_space<vmem>>, vector<8x128xf32>,
    return
  }
  func.func @transform_0(%arg0: i32) -> (i32, i32) {
    %c0_i32 = arith.constant 0 : i32
    %c0_i32_0 = arith.constant 0 : i32
    return %arg0, %c0_i32 : i32, i32
  }
  func.func @transform_1(%arg0: i32) -> (i32, i32) {
    %c0_i32 = arith.constant 0 : i32
    %c0_i32_0 = arith.constant 0 : i32
    %c0_i32_1 = arith.constant 0 : i32
    return %c0_i32, %c0_i32_0 : i32, i32
  }
  func.func @transform_2(%arg0: i32) -> (i32, i32) {
    %c0_i32 = arith.constant 0 : i32
    %c0_i32_0 = arith.constant 0 : i32
    %c0_i32_1 = arith.constant 0 : i32
    return %c0_i32, %c0_i32_0 : i32, i32
  }
  func.func @transform_3(%arg0: i32) -> (i32, i32) {
    %c0_i32 = arith.constant 0 : i32
    %c0_i32_0 = arith.constant 0 : i32
    %c0_i32_1 = arith.constant 0 : i32
    return %c0_i32, %c0_i32_0 : i32, i32
  }
  func.func @transform_4(%arg0: i32) -> (i32, i32) {
    %c0_i32 = arith.constant 0 : i32
    %c0_i32_0 = arith.constant 0 : i32
    %c0_i32_1 = arith.constant 0 : i32
    return %c0_i32, %c0_i32_0 : i32, i32
  }
  func.func @transform_5(%arg0: i32) -> (i32, i32) {
    %c0_i32 = arith.constant 0 : i32
    %c0_i32_0 = arith.constant 0 : i32
    %c0_i32_1 = arith.constant 0 : i32
    return %c0_i32, %c0_i32_0 : i32, i32
  }
  func.func @transform_6(%arg0: i32) -> (i32, i32) {
    %c0_i32 = arith.constant 0 : i32
    %c0_i32_0 = arith.constant 0 : i32
    %c0_i32_1 = arith.constant 0 : i32
    return %c0_i32, %c0_i32_0 : i32, i32
  }
  func.func @transform_7(%arg0: i32) -> (i32, i32) {
    %c0_i32 = arith.constant 0 : i32
    %c0_i32_0 = arith.constant 0 : i32
    return %arg0, %c0_i32 : i32, i32
  }
}

</mosaic_0001>

<llo_original>
// kernel: tpu_custom_call.1
$region0: #{tpu_custom_call.1}
  #allocation0 [shape = 'u32[]', space=smem, size = 0x4, offset = 0x4, fixed_abs, tag = 'smem constant byte address 0x4 - core index']
  #allocation1 [shape = 'u32[144,128]{1,0:T(1,128)}', space=vmem, size = 0x12000, scoped, tag = 'internal scratch']
  %s0 = inlined_call_operand.hbm [shape: f32[8,128], index: 0, kind: input, shape index: {}]
  %s1 = inlined_call_operand.hbm [shape: bf16[128,128], index: 1, kind: input, shape index: {}]
  %s2 = inlined_call_operand.vmem [shape: f32[1,128], index: 2, kind: input, shape index: {}]
  %s3 = inlined_call_operand.hbm [shape: bf16[128,128], index: 3, kind: input, shape index: {}]
  %s4 = inlined_call_operand.vmem [shape: f32[1,128], index: 4, kind: input, shape index: {}]
  %s5 = inlined_call_operand.hbm [shape: bf16[128,128], index: 5, kind: input, shape index: {}]
  %s6 = inlined_call_operand.vmem [shape: f32[1,128], index: 6, kind: input, shape index: {}]
  %s7 = inlined_call_operand.hbm [shape: f32[8,128], index: 7, kind: output, shape index: {}]
  %s8 = sld [smem:[#allocation0]]
  $region54: #{tpu_custom_call.1} parent=0
    _
  %s10 = ssub.s32 1, %s8
  %s11 = scalar_select 0, %s10, %s8
  $region1: #{tpu_custom_call.1} parent=0
    #allocation2 [shape = 'u8[4096]{0}', space=vmem, size = 0x1000, scoped, tag = 'input window, operand 0, single buffered']
    #allocation3 [shape = 's32[1]{0}', space=sflag, size = 0x4, scoped, tag = 'scoped memory for tpu_custom_call.1']
    #allocation4 [shape = 's32[1]{0}', space=sflag, size = 0x4, scoped, tag = 'scoped memory for tpu_custom_call.1']
    #allocation5 [shape = 'u8[32768]{0}', space=vmem, size = 0x8000, scoped, tag = 'input window, operand 1, single buffered']
    #allocation6 [shape = 's32[1]{0}', space=sflag, size = 0x4, scoped, tag = 'scoped memory for tpu_custom_call.1']
    #allocation7 [shape = 'u8[32768]{0}', space=vmem, size = 0x8000, scoped, tag = 'input window, operand 3, single buffered']
    #allocation8 [shape = 'u8[32768]{0}', space=vmem, size = 0x8000, scoped, tag = 'input window, operand 5, single buffered']
    #allocation9 [shape = 's32[1]{0}', space=sflag, size = 0x4, scoped, tag = 'scoped memory for tpu_custom_call.1']
    #allocation10 [shape = 'u8[4096]{0}', space=vmem, size = 0x1000, scoped, tag = 'output window, operand 0, single buffered']
    %12 = vsyncpa [#allocation3], 0
    %13 = vsyncpa [#allocation6], 0
    %14 = vsyncpa [#allocation9], 0
    %15 = vsyncpa [#allocation4], 0
    // Predicated region
    $region2: #{tpu_custom_call.1} parent=1 // pred_check
      _
    $region3: #{tpu_custom_call.1} parent=1 // pred_check_branch
      %17 = sbr.rel (0) target = $region5
    $region4: #{tpu_custom_call.1} parent=1 // pred_region
      %s19 = ssub.s32 128, 128
      %20 = vsyncadd [#allocation3], %s19
      %s22 = sshll.u32 [#allocation2], 4
      %s23 = int_to_ptr.vmem [resolvable:$true] %s22
      %25 = dma.hbm_to_vmem [thread:$0]  %s0, 128, %s23, [#allocation3]
    $region5: #{tpu_custom_call.1} parent=1 // pred_fallthru
      _
    // Predicated region
    $region6: #{tpu_custom_call.1} parent=1 // pred_check
      _
    $region7: #{tpu_custom_call.1} parent=1 // pred_check_branch
      %27 = sbr.rel (0) target = $region9
    $region8: #{tpu_custom_call.1} parent=1 // pred_region
      %s29 = ssub.s32 1024, 1024
      %30 = vsyncadd [#allocation6], %s29
      %s31 = sshll.u32 [#allocation5], 4
      %s32 = int_to_ptr.vmem [resolvable:$true] %s31
      %37 = dma.hbm_to_vmem [thread:$0]  %s1, 1024, %s32, [#allocation6], 64, 64, 4
    $region9: #{tpu_custom_call.1} parent=1 // pred_fallthru
      _
    // Predicated region
    $region10: #{tpu_custom_call.1} parent=1 // pred_check
      _
    $region11: #{tpu_custom_call.1} parent=1 // pred_check_branch
      %39 = sbr.rel (0) target = $region13
    $region12: #{tpu_custom_call.1} parent=1 // pred_region
      _
    $region13: #{tpu_custom_call.1} parent=1 // pred_fallthru
      _
    // Predicated region
    $region14: #{tpu_custom_call.1} parent=1 // pred_check
      _
    $region15: #{tpu_custom_call.1} parent=1 // pred_check_branch
      %41 = sbr.rel (0) target = $region17
    $region16: #{tpu_custom_call.1} parent=1 // pred_region
      %s43 = ssub.s32 1024, 1024
      %44 = vsyncadd [#allocation6], %s43
      %s45 = sshll.u32 [#allocation7], 4
      %s46 = int_to_ptr.vmem [resolvable:$true] %s45
      %51 = dma.hbm_to_vmem [thread:$0]  %s3, 1024, %s46, [#allocation6], 64, 64, 4
    $region17: #{tpu_custom_call.1} parent=1 // pred_fallthru
      _
    // Predicated region
    $region18: #{tpu_custom_call.1} parent=1 // pred_check
      _
    $region19: #{tpu_custom_call.1} parent=1 // pred_check_branch
      %53 = sbr.rel (0) target = $region21
    $region20: #{tpu_custom_call.1} parent=1 // pred_region
      _
    $region21: #{tpu_custom_call.1} parent=1 // pred_fallthru
      _
    // Predicated region
    $region22: #{tpu_custom_call.1} parent=1 // pred_check
      _
    $region23: #{tpu_custom_call.1} parent=1 // pred_check_branch
      %55 = sbr.rel (0) target = $region25
    $region24: #{tpu_custom_call.1} parent=1 // pred_region
      %s57 = ssub.s32 1024, 1024
      %58 = vsyncadd [#allocation9], %s57
      %s59 = sshll.u32 [#allocation8], 4
      %s60 = int_to_ptr.vmem [resolvable:$true] %s59
      %65 = dma.hbm_to_vmem [thread:$0]  %s5, 1024, %s60, [#allocation9], 64, 64, 4
    $region25: #{tpu_custom_call.1} parent=1 // pred_fallthru
      _
    // Predicated region
    $region26: #{tpu_custom_call.1} parent=1 // pred_check
      _
    $region27: #{tpu_custom_call.1} parent=1 // pred_check_branch
      %67 = sbr.rel (0) target = $region29
    $region28: #{tpu_custom_call.1} parent=1 // pred_region
      _
    $region29: #{tpu_custom_call.1} parent=1 // pred_fallthru
      _
    // Predicated region
    $region30: #{tpu_custom_call.1} parent=1 // pred_check
      _
    $region31: #{tpu_custom_call.1} parent=1 // pred_check_branch
      %69 = sbr.rel (0) target = $region33
    $region32: #{tpu_custom_call.1} parent=1 // pred_region
      %70 = dma.done [#allocation3], 128
    $region33: #{tpu_custom_call.1} parent=1 // pred_fallthru
      _
    // Predicated region
    $region34: #{tpu_custom_call.1} parent=1 // pred_check
      _
    $region35: #{tpu_custom_call.1} parent=1 // pred_check_branch
      %72 = sbr.rel (0) target = $region37
    $region36: #{tpu_custom_call.1} parent=1 // pred_region
      %73 = dma.done [#allocation6], 1024
    $region37: #{tpu_custom_call.1} parent=1 // pred_fallthru
      _
    // Predicated region
    $region38: #{tpu_custom_call.1} parent=1 // pred_check
      _
    $region39: #{tpu_custom_call.1} parent=1 // pred_check_branch
      %75 = sbr.rel (0) target = $region41
    $region40: #{tpu_custom_call.1} parent=1 // pred_region
      %76 = dma.done [#allocation6], 1024
    $region41: #{tpu_custom_call.1} parent=1 // pred_fallthru
      _
    // Predicated region
    $region42: #{tpu_custom_call.1} parent=1 // pred_check
      _
    $region43: #{tpu_custom_call.1} parent=1 // pred_check_branch
      %78 = sbr.rel (0) target = $region45
    $region44: #{tpu_custom_call.1} parent=1 // pred_region
      %79 = dma.done [#allocation9], 1024
    $region45: #{tpu_custom_call.1} parent=1 // pred_fallthru
      _
    %v81 = vld [vmem:[#allocation2] sm:$0xff]
    %v82 = vld [vmem:[#allocation5] sm:$0xf]
    %v83 = vld [vmem:[#allocation5 + $0x4] sm:$0xf]
    %v84 = vld [vmem:[#allocation5 + $0x8] sm:$0xf]
    %v85 = vld [vmem:[#allocation5 + $0xc] sm:$0xf]
    %v86 = vld [vmem:[#allocation5 + $0x10] sm:$0xf]
    %v87 = vld [vmem:[#allocation5 + $0x14] sm:$0xf]
    %v88 = vld [vmem:[#allocation5 + $0x18] sm:$0xf]
    %v89 = vld [vmem:[#allocation5 + $0x1c] sm:$0xf]
    %v90 = vld [vmem:[#allocation5 + $0x20] sm:$0xf]
    %v91 = vld [vmem:[#allocation5 + $0x24] sm:$0xf]
    %v92 = vld [vmem:[#allocation5 + $0x28] sm:$0xf]
    %v93 = vld [vmem:[#allocation5 + $0x2c] sm:$0xf]
    %v94 = vld [vmem:[#allocation5 + $0x30] sm:$0xf]
    %v95 = vld [vmem:[#allocation5 + $0x34] sm:$0xf]
    %v96 = vld [vmem:[#allocation5 + $0x38] sm:$0xf]
    %v97 = vld [vmem:[#allocation5 + $0x3c] sm:$0xf]
    %v98 = vld [vmem:[%s2] sm:$0x1]
    %v99 = vpack.c.bf16 %v81, %v81
    %v101 = vlaneseq
    %v102 = vshrl.u32 %v101, 7
    %v103 = vsub.s32 0, %v102
    %v104 = vrot.slane %v98, %v103
    %v122 = vunpack.c.l.b16 %v82
    %v123 = vunpack.c.l.b16 %v83
    %v124 = vunpack.c.l.b16 %v84
    %v125 = vunpack.c.l.b16 %v85
    %v126 = vunpack.c.l.b16 %v86
    %v127 = vunpack.c.l.b16 %v87
    %v128 = vunpack.c.l.b16 %v88
    %v129 = vunpack.c.l.b16 %v89
    %v130 = vunpack.c.l.b16 %v90
    %v131 = vunpack.c.l.b16 %v91
    %v132 = vunpack.c.l.b16 %v92
    %v133 = vunpack.c.l.b16 %v93
    %v134 = vunpack.c.l.b16 %v94
    %v135 = vunpack.c.l.b16 %v95
    %v136 = vunpack.c.l.b16 %v96
    %v137 = vunpack.c.l.b16 %v97
    %v138 = vpack.c.b16 %v123, %v122
    %v139 = vpack.c.b16 %v125, %v124
    %v140 = vpack.c.b16 %v127, %v126
    %v141 = vpack.c.b16 %v129, %v128
    %v142 = vpack.c.b16 %v131, %v130
    %v143 = vpack.c.b16 %v133, %v132
    %v144 = vpack.c.b16 %v135, %v134
    %v145 = vpack.c.b16 %v137, %v136
    %154 = vmatprep.subr.bf16.mxu0 0
    %155 = vmatpush1.bf16.msra.mxu0 %v145
    %156 = vmatprep.subr.bf16.mxu0 0
    %157 = vmatpush1.bf16.msra.mxu0 %v144
    %158 = vmatprep.subr.bf16.mxu0 0
    %159 = vmatpush1.bf16.msra.mxu0 %v143
    %160 = vmatprep.subr.bf16.mxu0 0
    %161 = vmatpush1.bf16.msra.mxu0 %v142
    %162 = vmatprep.subr.bf16.mxu0 0
    %163 = vmatpush1.bf16.msra.mxu0 %v141
    %164 = vmatprep.subr.bf16.mxu0 0
    %165 = vmatpush1.bf16.msra.mxu0 %v140
    %166 = vmatprep.subr.bf16.mxu0 0
    %167 = vmatpush1.bf16.msra.mxu0 %v139
    %168 = vmatprep.subr.bf16.mxu0 0
    %169 = vmatpush1.bf16.msra.mxu0 %v138
    %170 = vmatprep.subr.bf16.mxu0 0
    %171 = vmatpush2.bf16.msra.mxu0 0
    %172 = vmatprep.subr.bf16.mxu0 0
    %173 = vmatpush2.bf16.msra.mxu0 0
    %174 = vmatprep.subr.bf16.mxu0 0
    %175 = vmatpush2.bf16.msra.mxu0 0
    %176 = vmatprep.subr.bf16.mxu0 0
    %177 = vmatpush2.bf16.msra.mxu0 0
    %178 = vmatprep.subr.bf16.mxu0 0
    %179 = vmatpush2.bf16.msra.mxu0 0
    %180 = vmatprep.subr.bf16.mxu0 0
    %181 = vmatpush2.bf16.msra.mxu0 0
    %182 = vmatprep.subr.bf16.mxu0 0
    %183 = vmatpush2.bf16.msra.mxu0 0
    %184 = vmatprep.subr.bf16.mxu0 0
    %185 = vmatpush2.bf16.msra.mxu0 0
    %186 = vmatprep.mubr.bf16.mxu0 0
    %187 = vmatmul.mubr.bf16.gmra.mxu0 %v99
    %v188 = vpop.f32.mrf.mxu0
    %v189 = vadd.f32 %v104, %v188
    %v190 = vpop.f32.mrf.mxu0
    %v191 = vpop.f32.mrf.mxu0
    %v192 = vpop.f32.mrf.mxu0
    %193 = vdwg.mxu0
    %v194 = vmul.f32 %v189, 0.5
    %v195 = vmul.f32 %v189, 0.70710677
    %v196 = verf.f32.pop %v195
    %v197 = vadd.f32 %v196, 1.0
    %v198 = vmul.f32 %v194, %v197
    %v199 = vld [vmem:[#allocation7] sm:$0xf]
    %v200 = vld [vmem:[#allocation7 + $0x4] sm:$0xf]
    %v201 = vld [vmem:[#allocation7 + $0x8] sm:$0xf]
    %v202 = vld [vmem:[#allocation7 + $0xc] sm:$0xf]
    %v203 = vld [vmem:[#allocation7 + $0x10] sm:$0xf]
    %v204 = vld [vmem:[#allocation7 + $0x14] sm:$0xf]
    %v205 = vld [vmem:[#allocation7 + $0x18] sm:$0xf]
    %v206 = vld [vmem:[#allocation7 + $0x1c] sm:$0xf]
    %v207 = vld [vmem:[#allocation7 + $0x20] sm:$0xf]
    %v208 = vld [vmem:[#allocation7 + $0x24] sm:$0xf]
    %v209 = vld [vmem:[#allocation7 + $0x28] sm:$0xf]
    %v210 = vld [vmem:[#allocation7 + $0x2c] sm:$0xf]
    %v211 = vld [vmem:[#allocation7 + $0x30] sm:$0xf]
    %v212 = vld [vmem:[#allocation7 + $0x34] sm:$0xf]
    %v213 = vld [vmem:[#allocation7 + $0x38] sm:$0xf]
    %v214 = vld [vmem:[#allocation7 + $0x3c] sm:$0xf]
    %v215 = vld [vmem:[%s4] sm:$0x1]
    %v216 = vpack.c.bf16 %v198, %v198
    %v218 = vlaneseq
    %v219 = vshrl.u32 %v218, 7
    %v220 = vsub.s32 0, %v219
    %v221 = vrot.slane %v215, %v220
    %v239 = vunpack.c.l.b16 %v199
    %v240 = vunpack.c.l.b16 %v200
    %v241 = vunpack.c.l.b16 %v201
    %v242 = vunpack.c.l.b16 %v202
    %v243 = vunpack.c.l.b16 %v203
    %v244 = vunpack.c.l.b16 %v204
    %v245 = vunpack.c.l.b16 %v205
    %v246 = vunpack.c.l.b16 %v206
    %v247 = vunpack.c.l.b16 %v207
    %v248 = vunpack.c.l.b16 %v208
    %v249 = vunpack.c.l.b16 %v209
    %v250 = vunpack.c.l.b16 %v210
    %v251 = vunpack.c.l.b16 %v211
    %v252 = vunpack.c.l.b16 %v212
    %v253 = vunpack.c.l.b16 %v213
    %v254 = vunpack.c.l.b16 %v214
    %v255 = vpack.c.b16 %v240, %v239
    %v256 = vpack.c.b16 %v242, %v241
    %v257 = vpack.c.b16 %v244, %v243
    %v258 = vpack.c.b16 %v246, %v245
    %v259 = vpack.c.b16 %v248, %v247
    %v260 = vpack.c.b16 %v250, %v249
    %v261 = vpack.c.b16 %v252, %v251
    %v262 = vpack.c.b16 %v254, %v253
    %271 = vmatprep.subr.bf16.mxu0 0
    %272 = vmatpush1.bf16.msra.mxu0 %v262
    %273 = vmatprep.subr.bf16.mxu0 0
    %274 = vmatpush1.bf16.msra.mxu0 %v261
    %275 = vmatprep.subr.bf16.mxu0 0
    %276 = vmatpush1.bf16.msra.mxu0 %v260
    %277 = vmatprep.subr.bf16.mxu0 0
    %278 = vmatpush1.bf16.msra.mxu0 %v259
    %279 = vmatprep.subr.bf16.mxu0 0
    %280 = vmatpush1.bf16.msra.mxu0 %v258
    %281 = vmatprep.subr.bf16.mxu0 0
    %282 = vmatpush1.bf16.msra.mxu0 %v257
    %283 = vmatprep.subr.bf16.mxu0 0
    %284 = vmatpush1.bf16.msra.mxu0 %v256
    %285 = vmatprep.subr.bf16.mxu0 0
    %286 = vmatpush1.bf16.msra.mxu0 %v255
    %287 = vmatprep.subr.bf16.mxu0 0
    %288 = vmatpush2.bf16.msra.mxu0 0
    %289 = vmatprep.subr.bf16.mxu0 0
    %290 = vmatpush2.bf16.msra.mxu0 0
    %291 = vmatprep.subr.bf16.mxu0 0
    %292 = vmatpush2.bf16.msra.mxu0 0
    %293 = vmatprep.subr.bf16.mxu0 0
    %294 = vmatpush2.bf16.msra.mxu0 0
    %295 = vmatprep.subr.bf16.mxu0 0
    %296 = vmatpush2.bf16.msra.mxu0 0
    %297 = vmatprep.subr.bf16.mxu0 0
    %298 = vmatpush2.bf16.msra.mxu0 0
    %299 = vmatprep.subr.bf16.mxu0 0
    %300 = vmatpush2.bf16.msra.mxu0 0
    %301 = vmatprep.subr.bf16.mxu0 0
    %302 = vmatpush2.bf16.msra.mxu0 0
    %303 = vmatprep.mubr.bf16.mxu0 0
    %304 = vmatmul.mubr.bf16.gmra.mxu0 %v216
    %v305 = vpop.f32.mrf.mxu0
    %v306 = vadd.f32 %v221, %v305
    %v307 = vpop.f32.mrf.mxu0
    %v308 = vpop.f32.mrf.mxu0
    %v309 = vpop.f32.mrf.mxu0
    %310 = vdwg.mxu0
    %v311 = vmul.f32 %v306, 0.5
    %v312 = vmul.f32 %v306, 0.70710677
    %v313 = verf.f32.pop %v312
    %v314 = vadd.f32 %v313, 1.0
    %v315 = vmul.f32 %v311, %v314
    %v316 = vld [vmem:[#allocation8] sm:$0xf]
    %v317 = vld [vmem:[#allocation8 + $0x4] sm:$0xf]
    %v318 = vld [vmem:[#allocation8 + $0x8] sm:$0xf]
    %v319 = vld [vmem:[#allocation8 + $0xc] sm:$0xf]
    %v320 = vld [vmem:[#allocation8 + $0x10] sm:$0xf]
    %v321 = vld [vmem:[#allocation8 + $0x14] sm:$0xf]
    %v322 = vld [vmem:[#allocation8 + $0x18] sm:$0xf]
    %v323 = vld [vmem:[#allocation8 + $0x1c] sm:$0xf]
    %v324 = vld [vmem:[#allocation8 + $0x20] sm:$0xf]
    %v325 = vld [vmem:[#allocation8 + $0x24] sm:$0xf]
    %v326 = vld [vmem:[#allocation8 + $0x28] sm:$0xf]
    %v327 = vld [vmem:[#allocation8 + $0x2c] sm:$0xf]
    %v328 = vld [vmem:[#allocation8 + $0x30] sm:$0xf]
    %v329 = vld [vmem:[#allocation8 + $0x34] sm:$0xf]
    %v330 = vld [vmem:[#allocation8 + $0x38] sm:$0xf]
    %v331 = vld [vmem:[#allocation8 + $0x3c] sm:$0xf]
    %v332 = vld [vmem:[%s6] sm:$0x1]
    %v333 = vpack.c.bf16 %v315, %v315
    %v335 = vlaneseq
    %v336 = vshrl.u32 %v335, 7
    %v337 = vsub.s32 0, %v336
    %v338 = vrot.slane %v332, %v337
    %v356 = vunpack.c.l.b16 %v316
    %v357 = vunpack.c.l.b16 %v317
    %v358 = vunpack.c.l.b16 %v318
    %v359 = vunpack.c.l.b16 %v319
    %v360 = vunpack.c.l.b16 %v320
    %v361 = vunpack.c.l.b16 %v321
    %v362 = vunpack.c.l.b16 %v322
    %v363 = vunpack.c.l.b16 %v323
    %v364 = vunpack.c.l.b16 %v324
    %v365 = vunpack.c.l.b16 %v325
    %v366 = vunpack.c.l.b16 %v326
    %v367 = vunpack.c.l.b16 %v327
    %v368 = vunpack.c.l.b16 %v328
    %v369 = vunpack.c.l.b16 %v329
    %v370 = vunpack.c.l.b16 %v330
    %v371 = vunpack.c.l.b16 %v331
    %v372 = vpack.c.b16 %v357, %v356
    %v373 = vpack.c.b16 %v359, %v358
    %v374 = vpack.c.b16 %v361, %v360
    %v375 = vpack.c.b16 %v363, %v362
    %v376 = vpack.c.b16 %v365, %v364
    %v377 = vpack.c.b16 %v367, %v366
    %v378 = vpack.c.b16 %v369, %v368
    %v379 = vpack.c.b16 %v371, %v370
    %388 = vmatprep.subr.bf16.mxu0 0
    %389 = vmatpush1.bf16.msra.mxu0 %v379
    %390 = vmatprep.subr.bf16.mxu0 0
    %391 = vmatpush1.bf16.msra.mxu0 %v378
    %392 = vmatprep.subr.bf16.mxu0 0
    %393 = vmatpush1.bf16.msra.mxu0 %v377
    %394 = vmatprep.subr.bf16.mxu0 0
    %395 = vmatpush1.bf16.msra.mxu0 %v376
    %396 = vmatprep.subr.bf16.mxu0 0
    %397 = vmatpush1.bf16.msra.mxu0 %v375
    %398 = vmatprep.subr.bf16.mxu0 0
    %399 = vmatpush1.bf16.msra.mxu0 %v374
    %400 = vmatprep.subr.bf16.mxu0 0
    %401 = vmatpush1.bf16.msra.mxu0 %v373
    %402 = vmatprep.subr.bf16.mxu0 0
    %403 = vmatpush1.bf16.msra.mxu0 %v372
    %404 = vmatprep.subr.bf16.mxu0 0
    %405 = vmatpush2.bf16.msra.mxu0 0
    %406 = vmatprep.subr.bf16.mxu0 0
    %407 = vmatpush2.bf16.msra.mxu0 0
    %408 = vmatprep.subr.bf16.mxu0 0
    %409 = vmatpush2.bf16.msra.mxu0 0
    %410 = vmatprep.subr.bf16.mxu0 0
    %411 = vmatpush2.bf16.msra.mxu0 0
    %412 = vmatprep.subr.bf16.mxu0 0
    %413 = vmatpush2.bf16.msra.mxu0 0
    %414 = vmatprep.subr.bf16.mxu0 0
    %415 = vmatpush2.bf16.msra.mxu0 0
    %416 = vmatprep.subr.bf16.mxu0 0
    %417 = vmatpush2.bf16.msra.mxu0 0
    %418 = vmatprep.subr.bf16.mxu0 0
    %419 = vmatpush2.bf16.msra.mxu0 0
    %420 = vmatprep.mubr.bf16.mxu0 0
    %421 = vmatmul.mubr.bf16.gmra.mxu0 %v333
    %v422 = vpop.f32.mrf.mxu0
    %v423 = vadd.f32 %v338, %v422
    %v424 = vpop.f32.mrf.mxu0
    %v425 = vpop.f32.mrf.mxu0
    %v426 = vpop.f32.mrf.mxu0
    %427 = vdwg.mxu0
    %428 = vst [vmem:[#allocation10] sm:$0xff] %v423
    // Predicated region
    $region46: #{tpu_custom_call.1} parent=1 // pred_check
      _
    $region47: #{tpu_custom_call.1} parent=1 // pred_check_branch
      %430 = sbr.rel (0) target = $region49
    $region48: #{tpu_custom_call.1} parent=1 // pred_region
      %s432 = ssub.s32 128, 128
      %433 = vsyncadd [#allocation4], %s432
      %s435 = sshll.u32 [#allocation10], 4
      %s436 = int_to_ptr.vmem [resolvable:$true] %s435
      %438 = dma.vmem_to_hbm [thread:$0]  %s436, 128, %s7, [#allocation4]
    $region49: #{tpu_custom_call.1} parent=1 // pred_fallthru
      _
    // Predicated region
    $region50: #{tpu_custom_call.1} parent=1 // pred_check
      _
    $region51: #{tpu_custom_call.1} parent=1 // pred_check_branch
      %440 = sbr.rel (0) target = $region53
    $region52: #{tpu_custom_call.1} parent=1 // pred_region
      %441 = dma.done [#allocation4], 128
    $region53: #{tpu_custom_call.1} parent=1 // pred_fallthru
      _
    %442 = vsyncpa [#allocation3], 1
    %443 = vsyncpa [#allocation6], 1
    %444 = vsyncpa [#allocation9], 1
    %445 = vsyncpa [#allocation4], 1

// kernel: tpu_custom_call.1
$region0: #{tpu_custom_call.1}
  #allocation0 [shape = 'u32[]', space=smem, size = 0x4, offset = 0x4, fixed_abs, tag = 'smem constant byte address 0x4 - core index']
  #allocation1 [shape = 'u32[144,128]{1,0:T(1,128)}', space=vmem, size = 0x12000, scoped, tag = 'internal scratch']
  %s0 = inlined_call_operand.hbm [shape: f32[8,128], index: 0, kind: input, shape index: {}]
  %s1 = inlined_call_operand.hbm [shape: bf16[128,128], index: 1, kind: input, shape index: {}]
  %s2 = inlined_call_operand.vmem [shape: f32[1,128], index: 2, kind: input, shape index: {}]
  %s3 = inlined_call_operand.hbm [shape: bf16[128,128], index: 3, kind: input, shape index: {}]
  %s4 = inlined_call_operand.vmem [shape: f32[1,128], index: 4, kind: input, shape index: {}]
  %s5 = inlined_call_operand.hbm [shape: bf16[128,128], index: 5, kind: input, shape index: {}]
  %s6 = inlined_call_operand.vmem [shape: f32[1,128], index: 6, kind: input, shape index: {}]
  %s7 = inlined_call_operand.hbm [shape: f32[8,128], index: 7, kind: output, shape index: {}]
  %s8 = sld [smem:[#allocation0]]
  $region54: #{tpu_custom_call.1} parent=0
    _
  %s10 = ssub.s32 1, %s8
  %s11 = scalar_select 0, %s10, %s8
  $region1: #{tpu_custom_call.1} parent=0
    #allocation2 [shape = 'u8[4096]{0}', space=vmem, size = 0x1000, scoped, tag = 'input window, operand 0, single buffered']
    #allocation3 [shape = 's32[1]{0}', space=sflag, size = 0x4, scoped, tag = 'scoped memory for tpu_custom_call.1']
    #allocation4 [shape = 's32[1]{0}', space=sflag, size = 0x4, scoped, tag = 'scoped memory for tpu_custom_call.1']
    #allocation5 [shape = 'u8[32768]{0}', space=vmem, size = 0x8000, scoped, tag = 'input window, operand 1, single buffered']
    #allocation6 [shape = 's32[1]{0}', space=sflag, size = 0x4, scoped, tag = 'scoped memory for tpu_custom_call.1']
    #allocation7 [shape = 'u8[32768]{0}', space=vmem, size = 0x8000, scoped, tag = 'input window, operand 3, single buffered']
    #allocation8 [shape = 'u8[32768]{0}', space=vmem, size = 0x8000, scoped, tag = 'input window, operand 5, single buffered']
    #allocation9 [shape = 's32[1]{0}', space=sflag, size = 0x4, scoped, tag = 'scoped memory for tpu_custom_call.1']
    #allocation10 [shape = 'u8[4096]{0}', space=vmem, size = 0x1000, scoped, tag = 'output window, operand 0, single buffered']
    %12 = vsyncpa [#allocation3], 0
    %13 = vsyncpa [#allocation6], 0
    %14 = vsyncpa [#allocation9], 0
    %15 = vsyncpa [#allocation4], 0
    // Predicated region
    $region2: #{tpu_custom_call.1} parent=1 // pred_check
      _
    $region3: #{tpu_custom_call.1} parent=1 // pred_check_branch
      %17 = sbr.rel (0) target = $region5
    $region4: #{tpu_custom_call.1} parent=1 // pred_region
      %s19 = ssub.s32 128, 128
      %20 = vsyncadd [#allocation3], %s19
      %s22 = sshll.u32 [#allocation2], 4
      %s23 = int_to_ptr.vmem [resolvable:$true] %s22
      %25 = dma.hbm_to_vmem [thread:$0]  %s0, 128, %s23, [#allocation3]
    $region5: #{tpu_custom_call.1} parent=1 // pred_fallthru
      _
    // Predicated region
    $region6: #{tpu_custom_call.1} parent=1 // pred_check
      _
    $region7: #{tpu_custom_call.1} parent=1 // pred_check_branch
      %27 = sbr.rel (0) target = $region9
    $region8: #{tpu_custom_call.1} parent=1 // pred_region
      %s29 = ssub.s32 1024, 1024
      %30 = vsyncadd [#allocation6], %s29
      %s31 = sshll.u32 [#allocation5], 4
      %s32 = int_to_ptr.vmem [resolvable:$true] %s31
      %37 = dma.hbm_to_vmem [thread:$0]  %s1, 1024, %s32, [#allocation6], 64, 64, 4
    $region9: #{tpu_custom_call.1} parent=1 // pred_fallthru
      _
    // Predicated region
    $region10: #{tpu_custom_call.1} parent=1 // pred_check
      _
    $region11: #{tpu_custom_call.1} parent=1 // pred_check_branch
      %39 = sbr.rel (0) target = $region13
    $region12: #{tpu_custom_call.1} parent=1 // pred_region
      _
    $region13: #{tpu_custom_call.1} parent=1 // pred_fallthru
      _
    // Predicated region
    $region14: #{tpu_custom_call.1} parent=1 // pred_check
      _
    $region15: #{tpu_custom_call.1} parent=1 // pred_check_branch
      %41 = sbr.rel (0) target = $region17
    $region16: #{tpu_custom_call.1} parent=1 // pred_region
      %s43 = ssub.s32 1024, 1024
      %44 = vsyncadd [#allocation6], %s43
      %s45 = sshll.u32 [#allocation7], 4
      %s46 = int_to_ptr.vmem [resolvable:$true] %s45
      %51 = dma.hbm_to_vmem [thread:$0]  %s3, 1024, %s46, [#allocation6], 64, 64, 4
    $region17: #{tpu_custom_call.1} parent=1 // pred_fallthru
      _
    // Predicated region
    $region18: #{tpu_custom_call.1} parent=1 // pred_check
      _
    $region19: #{tpu_custom_call.1} parent=1 // pred_check_branch
      %53 = sbr.rel (0) target = $region21
    $region20: #{tpu_custom_call.1} parent=1 // pred_region
      _
    $region21: #{tpu_custom_call.1} parent=1 // pred_fallthru
      _
    // Predicated region
    $region22: #{tpu_custom_call.1} parent=1 // pred_check
      _
    $region23: #{tpu_custom_call.1} parent=1 // pred_check_branch
      %55 = sbr.rel (0) target = $region25
    $region24: #{tpu_custom_call.1} parent=1 // pred_region
      %s57 = ssub.s32 1024, 1024
      %58 = vsyncadd [#allocation9], %s57
      %s59 = sshll.u32 [#allocation8], 4
      %s60 = int_to_ptr.vmem [resolvable:$true] %s59
      %65 = dma.hbm_to_vmem [thread:$0]  %s5, 1024, %s60, [#allocation9], 64, 64, 4
    $region25: #{tpu_custom_call.1} parent=1 // pred_fallthru
      _
    // Predicated region
    $region26: #{tpu_custom_call.1} parent=1 // pred_check
      _
    $region27: #{tpu_custom_call.1} parent=1 // pred_check_branch
      %67 = sbr.rel (0) target = $region29
    $region28: #{tpu_custom_call.1} parent=1 // pred_region
      _
    $region29: #{tpu_custom_call.1} parent=1 // pred_fallthru
      _
    // Predicated region
    $region30: #{tpu_custom_call.1} parent=1 // pred_check
      _
    $region31: #{tpu_custom_call.1} parent=1 // pred_check_branch
      %69 = sbr.rel (0) target = $region33
    $region32: #{tpu_custom_call.1} parent=1 // pred_region
      %70 = dma.done [#allocation3], 128
    $region33: #{tpu_custom_call.1} parent=1 // pred_fallthru
      _
    // Predicated region
    $region34: #{tpu_custom_call.1} parent=1 // pred_check
      _
    $region35: #{tpu_custom_call.1} parent=1 // pred_check_branch
      %72 = sbr.rel (0) target = $region37
    $region36: #{tpu_custom_call.1} parent=1 // pred_region
      %73 = dma.done [#allocation6], 1024
    $region37: #{tpu_custom_call.1} parent=1 // pred_fallthru
      _
    // Predicated region
    $region38: #{tpu_custom_call.1} parent=1 // pred_check
      _
    $region39: #{tpu_custom_call.1} parent=1 // pred_check_branch
      %75 = sbr.rel (0) target = $region41
    $region40: #{tpu_custom_call.1} parent=1 // pred_region
      %76 = dma.done [#allocation6], 1024
    $region41: #{tpu_custom_call.1} parent=1 // pred_fallthru
      _
    // Predicated region
    $region42: #{tpu_custom_call.1} parent=1 // pred_check
      _
    $region43: #{tpu_custom_call.1} parent=1 // pred_check_branch
      %78 = sbr.rel (0) target = $region45
    $region44: #{tpu_custom_call.1} parent=1 // pred_region
      %79 = dma.done [#allocation9], 1024
    $region45: #{tpu_custom_call.1} parent=1 // pred_fallthru
      _
    %v81 = vld [vmem:[#allocation2] sm:$0xff]
    %v82 = vld [vmem:[#allocation5] sm:$0xf]
    %v83 = vld [vmem:[#allocation5 + $0x4] sm:$0xf]
    %v84 = vld [vmem:[#allocation5 + $0x8] sm:$0xf]
    %v85 = vld [vmem:[#allocation5 + $0xc] sm:$0xf]
    %v86 = vld [vmem:[#allocation5 + $0x10] sm:$0xf]
    %v87 = vld [vmem:[#allocation5 + $0x14] sm:$0xf]
    %v88 = vld [vmem:[#allocation5 + $0x18] sm:$0xf]
    %v89 = vld [vmem:[#allocation5 + $0x1c] sm:$0xf]
    %v90 = vld [vmem:[#allocation5 + $0x20] sm:$0xf]
    %v91 = vld [vmem:[#allocation5 + $0x24] sm:$0xf]
    %v92 = vld [vmem:[#allocation5 + $0x28] sm:$0xf]
    %v93 = vld [vmem:[#allocation5 + $0x2c] sm:$0xf]
    %v94 = vld [vmem:[#allocation5 + $0x30] sm:$0xf]
    %v95 = vld [vmem:[#allocation5 + $0x34] sm:$0xf]
    %v96 = vld [vmem:[#allocation5 + $0x38] sm:$0xf]
    %v97 = vld [vmem:[#allocation5 + $0x3c] sm:$0xf]
    %v98 = vld [vmem:[%s2] sm:$0x1]
    %v99 = vpack.c.bf16 %v81, %v81
    %v101 = vlaneseq
    %v102 = vshrl.u32 %v101, 7
    %v103 = vsub.s32 0, %v102
    %v104 = vrot.slane %v98, %v103
    %v122 = vunpack.c.l.b16 %v82
    %v123 = vunpack.c.l.b16 %v83
    %v124 = vunpack.c.l.b16 %v84
    %v125 = vunpack.c.l.b16 %v85
    %v126 = vunpack.c.l.b16 %v86
    %v127 = vunpack.c.l.b16 %v87
    %v128 = vunpack.c.l.b16 %v88
    %v129 = vunpack.c.l.b16 %v89
    %v130 = vunpack.c.l.b16 %v90
    %v131 = vunpack.c.l.b16 %v91
    %v132 = vunpack.c.l.b16 %v92
    %v133 = vunpack.c.l.b16 %v93
    %v134 = vunpack.c.l.b16 %v94
    %v135 = vunpack.c.l.b16 %v95
    %v136 = vunpack.c.l.b16 %v96
    %v137 = vunpack.c.l.b16 %v97
    %v138 = vpack.c.b16 %v123, %v122
    %v139 = vpack.c.b16 %v125, %v124
    %v140 = vpack.c.b16 %v127, %v126
    %v141 = vpack.c.b16 %v129, %v128
    %v142 = vpack.c.b16 %v131, %v130
    %v143 = vpack.c.b16 %v133, %v132
    %v144 = vpack.c.b16 %v135, %v134
    %v145 = vpack.c.b16 %v137, %v136
    %154 = vmatprep.subr.bf16.mxu0 0
    %155 = vmatpush1.bf16.msra.mxu0 %v145
    %156 = vmatprep.subr.bf16.mxu0 0
    %157 = vmatpush1.bf16.msra.mxu0 %v144
    %158 = vmatprep.subr.bf16.mxu0 0
    %159 = vmatpush1.bf16.msra.mxu0 %v143
    %160 = vmatprep.subr.bf16.mxu0 0
    %161 = vmatpush1.bf16.msra.mxu0 %v142
    %162 = vmatprep.subr.bf16.mxu0 0
    %163 = vmatpush1.bf16.msra.mxu0 %v141
    %164 = vmatprep.subr.bf16.mxu0 0
    %165 = vmatpush1.bf16.msra.mxu0 %v140
    %166 = vmatprep.subr.bf16.mxu0 0
    %167 = vmatpush1.bf16.msra.mxu0 %v139
    %168 = vmatprep.subr.bf16.mxu0 0
    %169 = vmatpush1.bf16.msra.mxu0 %v138
    %170 = vmatprep.subr.bf16.mxu0 0
    %171 = vmatpush2.bf16.msra.mxu0 0
    %172 = vmatprep.subr.bf16.mxu0 0
    %173 = vmatpush2.bf16.msra.mxu0 0
    %174 = vmatprep.subr.bf16.mxu0 0
    %175 = vmatpush2.bf16.msra.mxu0 0
    %176 = vmatprep.subr.bf16.mxu0 0
    %177 = vmatpush2.bf16.msra.mxu0 0
    %178 = vmatprep.subr.bf16.mxu0 0
    %179 = vmatpush2.bf16.msra.mxu0 0
    %180 = vmatprep.subr.bf16.mxu0 0
    %181 = vmatpush2.bf16.msra.mxu0 0
    %182 = vmatprep.subr.bf16.mxu0 0
    %183 = vmatpush2.bf16.msra.mxu0 0
    %184 = vmatprep.subr.bf16.mxu0 0
    %185 = vmatpush2.bf16.msra.mxu0 0
    %186 = vmatprep.mubr.bf16.mxu0 0
    %187 = vmatmul.mubr.bf16.gmra.mxu0 %v99
    %v188 = vpop.f32.mrf.mxu0
    %v189 = vadd.f32 %v104, %v188
    %v190 = vpop.f32.mrf.mxu0
    %v191 = vpop.f32.mrf.mxu0
    %v192 = vpop.f32.mrf.mxu0
    %193 = vdwg.mxu0
    %v194 = vmul.f32 %v189, 0.5
    %v195 = vmul.f32 %v189, 0.70710677
    %v196 = verf.f32.pop %v195
    %v197 = vadd.f32 %v196, 1.0
    %v198 = vmul.f32 %v194, %v197
    %v199 = vld [vmem:[#allocation7] sm:$0xf]
    %v200 = vld [vmem:[#allocation7 + $0x4] sm:$0xf]
    %v201 = vld [vmem:[#allocation7 + $0x8] sm:$0xf]
    %v202 = vld [vmem:[#allocation7 + $0xc] sm:$0xf]
    %v203 = vld [vmem:[#allocation7 + $0x10] sm:$0xf]
    %v204 = vld [vmem:[#allocation7 + $0x14] sm:$0xf]
    %v205 = vld [vmem:[#allocation7 + $0x18] sm:$0xf]
    %v206 = vld [vmem:[#allocation7 + $0x1c] sm:$0xf]
    %v207 = vld [vmem:[#allocation7 + $0x20] sm:$0xf]
    %v208 = vld [vmem:[#allocation7 + $0x24] sm:$0xf]
    %v209 = vld [vmem:[#allocation7 + $0x28] sm:$0xf]
    %v210 = vld [vmem:[#allocation7 + $0x2c] sm:$0xf]
    %v211 = vld [vmem:[#allocation7 + $0x30] sm:$0xf]
    %v212 = vld [vmem:[#allocation7 + $0x34] sm:$0xf]
    %v213 = vld [vmem:[#allocation7 + $0x38] sm:$0xf]
    %v214 = vld [vmem:[#allocation7 + $0x3c] sm:$0xf]
    %v215 = vld [vmem:[%s4] sm:$0x1]
    %v216 = vpack.c.bf16 %v198, %v198
    %v218 = vlaneseq
    %v219 = vshrl.u32 %v218, 7
    %v220 = vsub.s32 0, %v219
    %v221 = vrot.slane %v215, %v220
    %v239 = vunpack.c.l.b16 %v199
    %v240 = vunpack.c.l.b16 %v200
    %v241 = vunpack.c.l.b16 %v201
    %v242 = vunpack.c.l.b16 %v202
    %v243 = vunpack.c.l.b16 %v203
    %v244 = vunpack.c.l.b16 %v204
    %v245 = vunpack.c.l.b16 %v205
    %v246 = vunpack.c.l.b16 %v206
    %v247 = vunpack.c.l.b16 %v207
    %v248 = vunpack.c.l.b16 %v208
    %v249 = vunpack.c.l.b16 %v209
    %v250 = vunpack.c.l.b16 %v210
    %v251 = vunpack.c.l.b16 %v211
    %v252 = vunpack.c.l.b16 %v212
    %v253 = vunpack.c.l.b16 %v213
    %v254 = vunpack.c.l.b16 %v214
    %v255 = vpack.c.b16 %v240, %v239
    %v256 = vpack.c.b16 %v242, %v241
    %v257 = vpack.c.b16 %v244, %v243
    %v258 = vpack.c.b16 %v246, %v245
    %v259 = vpack.c.b16 %v248, %v247
    %v260 = vpack.c.b16 %v250, %v249
    %v261 = vpack.c.b16 %v252, %v251
    %v262 = vpack.c.b16 %v254, %v253
    %271 = vmatprep.subr.bf16.mxu0 0
    %272 = vmatpush1.bf16.msra.mxu0 %v262
    %273 = vmatprep.subr.bf16.mxu0 0
    %274 = vmatpush1.bf16.msra.mxu0 %v261
    %275 = vmatprep.subr.bf16.mxu0 0
    %276 = vmatpush1.bf16.msra.mxu0 %v260
    %277 = vmatprep.subr.bf16.mxu0 0
    %278 = vmatpush1.bf16.msra.mxu0 %v259
    %279 = vmatprep.subr.bf16.mxu0 0
    %280 = vmatpush1.bf16.msra.mxu0 %v258
    %281 = vmatprep.subr.bf16.mxu0 0
    %282 = vmatpush1.bf16.msra.mxu0 %v257
    %283 = vmatprep.subr.bf16.mxu0 0
    %284 = vmatpush1.bf16.msra.mxu0 %v256
    %285 = vmatprep.subr.bf16.mxu0 0
    %286 = vmatpush1.bf16.msra.mxu0 %v255
    %287 = vmatprep.subr.bf16.mxu0 0
    %288 = vmatpush2.bf16.msra.mxu0 0
    %289 = vmatprep.subr.bf16.mxu0 0
    %290 = vmatpush2.bf16.msra.mxu0 0
    %291 = vmatprep.subr.bf16.mxu0 0
    %292 = vmatpush2.bf16.msra.mxu0 0
    %293 = vmatprep.subr.bf16.mxu0 0
    %294 = vmatpush2.bf16.msra.mxu0 0
    %295 = vmatprep.subr.bf16.mxu0 0
    %296 = vmatpush2.bf16.msra.mxu0 0
    %297 = vmatprep.subr.bf16.mxu0 0
    %298 = vmatpush2.bf16.msra.mxu0 0
    %299 = vmatprep.subr.bf16.mxu0 0
    %300 = vmatpush2.bf16.msra.mxu0 0
    %301 = vmatprep.subr.bf16.mxu0 0
    %302 = vmatpush2.bf16.msra.mxu0 0
    %303 = vmatprep.mubr.bf16.mxu0 0
    %304 = vmatmul.mubr.bf16.gmra.mxu0 %v216
    %v305 = vpop.f32.mrf.mxu0
    %v306 = vadd.f32 %v221, %v305
    %v307 = vpop.f32.mrf.mxu0
    %v308 = vpop.f32.mrf.mxu0
    %v309 = vpop.f32.mrf.mxu0
    %310 = vdwg.mxu0
    %v311 = vmul.f32 %v306, 0.5
    %v312 = vmul.f32 %v306, 0.70710677
    %v313 = verf.f32.pop %v312
    %v314 = vadd.f32 %v313, 1.0
    %v315 = vmul.f32 %v311, %v314
    %v316 = vld [vmem:[#allocation8] sm:$0xf]
    %v317 = vld [vmem:[#allocation8 + $0x4] sm:$0xf]
    %v318 = vld [vmem:[#allocation8 + $0x8] sm:$0xf]
    %v319 = vld [vmem:[#allocation8 + $0xc] sm:$0xf]
    %v320 = vld [vmem:[#allocation8 + $0x10] sm:$0xf]
    %v321 = vld [vmem:[#allocation8 + $0x14] sm:$0xf]
    %v322 = vld [vmem:[#allocation8 + $0x18] sm:$0xf]
    %v323 = vld [vmem:[#allocation8 + $0x1c] sm:$0xf]
    %v324 = vld [vmem:[#allocation8 + $0x20] sm:$0xf]
    %v325 = vld [vmem:[#allocation8 + $0x24] sm:$0xf]
    %v326 = vld [vmem:[#allocation8 + $0x28] sm:$0xf]
    %v327 = vld [vmem:[#allocation8 + $0x2c] sm:$0xf]
    %v328 = vld [vmem:[#allocation8 + $0x30] sm:$0xf]
    %v329 = vld [vmem:[#allocation8 + $0x34] sm:$0xf]
    %v330 = vld [vmem:[#allocation8 + $0x38] sm:$0xf]
    %v331 = vld [vmem:[#allocation8 + $0x3c] sm:$0xf]
    %v332 = vld [vmem:[%s6] sm:$0x1]
    %v333 = vpack.c.bf16 %v315, %v315
    %v335 = vlaneseq
    %v336 = vshrl.u32 %v335, 7
    %v337 = vsub.s32 0, %v336
    %v338 = vrot.slane %v332, %v337
    %v356 = vunpack.c.l.b16 %v316
    %v357 = vunpack.c.l.b16 %v317
    %v358 = vunpack.c.l.b16 %v318
    %v359 = vunpack.c.l.b16 %v319
    %v360 = vunpack.c.l.b16 %v320
    %v361 = vunpack.c.l.b16 %v321
    %v362 = vunpack.c.l.b16 %v322
    %v363 = vunpack.c.l.b16 %v323
    %v364 = vunpack.c.l.b16 %v324
    %v365 = vunpack.c.l.b16 %v325
    %v366 = vunpack.c.l.b16 %v326
    %v367 = vunpack.c.l.b16 %v327
    %v368 = vunpack.c.l.b16 %v328
    %v369 = vunpack.c.l.b16 %v329
    %v370 = vunpack.c.l.b16 %v330
    %v371 = vunpack.c.l.b16 %v331
    %v372 = vpack.c.b16 %v357, %v356
    %v373 = vpack.c.b16 %v359, %v358
    %v374 = vpack.c.b16 %v361, %v360
    %v375 = vpack.c.b16 %v363, %v362
    %v376 = vpack.c.b16 %v365, %v364
    %v377 = vpack.c.b16 %v367, %v366
    %v378 = vpack.c.b16 %v369, %v368
    %v379 = vpack.c.b16 %v371, %v370
    %388 = vmatprep.subr.bf16.mxu0 0
    %389 = vmatpush1.bf16.msra.mxu0 %v379
    %390 = vmatprep.subr.bf16.mxu0 0
    %391 = vmatpush1.bf16.msra.mxu0 %v378
    %392 = vmatprep.subr.bf16.mxu0 0
    %393 = vmatpush1.bf16.msra.mxu0 %v377
    %394 = vmatprep.subr.bf16.mxu0 0
    %395 = vmatpush1.bf16.msra.mxu0 %v376
    %396 = vmatprep.subr.bf16.mxu0 0
    %397 = vmatpush1.bf16.msra.mxu0 %v375
    %398 = vmatprep.subr.bf16.mxu0 0
    %399 = vmatpush1.bf16.msra.mxu0 %v374
    %400 = vmatprep.subr.bf16.mxu0 0
    %401 = vmatpush1.bf16.msra.mxu0 %v373
    %402 = vmatprep.subr.bf16.mxu0 0
    %403 = vmatpush1.bf16.msra.mxu0 %v372
    %404 = vmatprep.subr.bf16.mxu0 0
    %405 = vmatpush2.bf16.msra.mxu0 0
    %406 = vmatprep.subr.bf16.mxu0 0
    %407 = vmatpush2.bf16.msra.mxu0 0
    %408 = vmatprep.subr.bf16.mxu0 0
    %409 = vmatpush2.bf16.msra.mxu0 0
    %410 = vmatprep.subr.bf16.mxu0 0
    %411 = vmatpush2.bf16.msra.mxu0 0
    %412 = vmatprep.subr.bf16.mxu0 0
    %413 = vmatpush2.bf16.msra.mxu0 0
    %414 = vmatprep.subr.bf16.mxu0 0
    %415 = vmatpush2.bf16.msra.mxu0 0
    %416 = vmatprep.subr.bf16.mxu0 0
    %417 = vmatpush2.bf16.msra.mxu0 0
    %418 = vmatprep.subr.bf16.mxu0 0
    %419 = vmatpush2.bf16.msra.mxu0 0
    %420 = vmatprep.mubr.bf16.mxu0 0
    %421 = vmatmul.mubr.bf16.gmra.mxu0 %v333
    %v422 = vpop.f32.mrf.mxu0
    %v423 = vadd.f32 %v338, %v422
    %v424 = vpop.f32.mrf.mxu0
    %v425 = vpop.f32.mrf.mxu0
    %v426 = vpop.f32.mrf.mxu0
    %427 = vdwg.mxu0
    %428 = vst [vmem:[#allocation10] sm:$0xff] %v423
    // Predicated region
    $region46: #{tpu_custom_call.1} parent=1 // pred_check
      _
    $region47: #{tpu_custom_call.1} parent=1 // pred_check_branch
      %430 = sbr.rel (0) target = $region49
    $region48: #{tpu_custom_call.1} parent=1 // pred_region
      %s432 = ssub.s32 128, 128
      %433 = vsyncadd [#allocation4], %s432
      %s435 = sshll.u32 [#allocation10], 4
      %s436 = int_to_ptr.vmem [resolvable:$true] %s435
      %438 = dma.vmem_to_hbm [thread:$0]  %s436, 128, %s7, [#allocation4]
    $region49: #{tpu_custom_call.1} parent=1 // pred_fallthru
      _
    // Predicated region
    $region50: #{tpu_custom_call.1} parent=1 // pred_check
      _
    $region51: #{tpu_custom_call.1} parent=1 // pred_check_branch
      %440 = sbr.rel (0) target = $region53
    $region52: #{tpu_custom_call.1} parent=1 // pred_region
      %441 = dma.done [#allocation4], 128
    $region53: #{tpu_custom_call.1} parent=1 // pred_fallthru
      _
    %442 = vsyncpa [#allocation3], 1
    %443 = vsyncpa [#allocation6], 1
    %444 = vsyncpa [#allocation9], 1
    %445 = vsyncpa [#allocation4], 1

</llo_original>
